<compile_context>
chip_gen: v7x
topology: tpu7x:2x2x1
jax: 0.10.0
libtpu: 0.0.40
codegen_flags: <defaults>
</compile_context>

<pallas_src>
import jax
import jax.numpy as jnp
from jax.experimental import pallas as pl
from jax.experimental.pallas import tpu as pltpu

_LANE = 128
_SUBLANE = 8


def _round_up(x, m):
    return ((x + m - 1) // m) * m


def _vmem_limit():
    cap = 64 * 1024 * 1024  # v7x physical VMEM; conservative default
    try:
        cap = int(pltpu.get_tpu_info().vmem_capacity_bytes)
    except Exception:
        pass
    return min(cap // 2, 64 * 1024 * 1024)


def _plan_tiles(B, F, D, itemsize):
    """Pick (tile_b, tile_fd, vmem_limit): batch-tile rows and the F*D reduction chunk."""
    vmem_limit = _vmem_limit()
    budget = vmem_limit // 2                      # our pipelined buffers; leave compiler headroom
    min_b = _SUBLANE * max(1, 4 // itemsize)      # 8 rows f32, 16 bf16, 32 int8 (sublane packing)
    lane_d = _round_up(D, _LANE)
    mxu_path = (D % _LANE) != 0

    def row_bytes(tfd):
        lane_fd = _round_up(tfd, _LANE)
        rb = 2 * lane_fd * itemsize               # double-buffered input tile
        rb += 2 * lane_d * itemsize               # double-buffered output tile
        rb += 2 * lane_d * 4                      # s / sq f32 scratch accumulators
        rb += 2 * lane_fd * 4 if mxu_path else 2 * lane_d * 4   # in-kernel f32 temporaries
        return rb

    def fixed_bytes(tfd):
        # resident stacked-identity matrix for the MXU reduction path
        return _round_up(tfd, _SUBLANE) * lane_d * 4 if mxu_path else 0

    def fits(tb, tfd):
        return fixed_bytes(tfd) + tb * row_bytes(tfd) <= budget

    # ---- F*D chunk (grid reduction axis).  Chunks cover whole fields and divide F*D. ----
    if mxu_path:
        # prefer the whole row; any smaller chunk must be lane (128) aligned
        m_cands = [m for m in range(F, 0, -1) if F % m == 0 and (m == F or (m * D) % _LANE == 0)]
    else:
        # D already lane-aligned; cap fields-per-chunk at 8 so the in-kernel field loop
        # stays a short static unroll with bounded live ranges.
        m_cands = [m for m in range(min(F, 8), 0, -1) if F % m == 0]
    m = next((mm for mm in m_cands if fits(min_b, mm * D)), m_cands[-1])
    tile_fd = m * D

    # ---- batch tile: multiple of min_b dividing round_up(B, 8)  (no padding copies),
    #      capped by VMEM and by ~4 MiB of input payload per grid step (roofline knee). ----
    b8 = _round_up(B, _SUBLANE)
    cap_rows = (budget - fixed_bytes(tile_fd)) // row_bytes(tile_fd)
    cap_rows = min(cap_rows, (4 << 20) // max(tile_fd * itemsize, 1))
    cap_rows = max(min_b, (cap_rows // min_b) * min_b)
    divisors = [d for d in range(min_b, b8 + 1, min_b) if b8 % d == 0 and d <= cap_rows]
    if not divisors:
        divisors = [min(min_b, b8)]

    def score(d):
        steps = pl.cdiv(B, d)
        # >=2 steps overlaps DMA with compute and feeds both v7x TensorCores; prefer even.
        return (steps >= 2, steps >= 2 and steps % 2 == 0, d)

    tile_b = max(divisors, key=score)
    return tile_b, tile_fd, vmem_limit


def _fm_kernel_fields(x_ref, o_ref, s_acc, sq_acc):
    """D % 128 == 0: per-field Ref slabs accumulated on the VPU into f32 scratch."""
    k = pl.program_id(1)

    @pl.when(k == 0)
    def _():
        s_acc[...] = jnp.zeros_like(s_acc)
        sq_acc[...] = jnp.zeros_like(sq_acc)

    d = o_ref.shape[-1]
    fields = x_ref.shape[-1] // d
    # Planner guarantees fields <= 8 here: short static unroll, one (tile_b, D) slab live
    # at a time (the Ref is sliced, never materialized whole).
    for f in range(fields):
        xf = x_ref[:, f * d:(f + 1) * d].astype(jnp.float32)
        s_acc[...] += xf
        sq_acc[...] += xf * xf

    @pl.when(k == pl.num_programs(1) - 1)
    def _():
        s = s_acc[...]
        o_ref[...] = (0.5 * (s * s - sq_acc[...])).astype(o_ref.dtype)


def _fm_kernel_mxu(x_ref, smat_ref, o_ref, s_acc, sq_acc):
    """D % 128 != 0: both field reductions as one MXU dot vs a stacked-identity matrix."""
    k = pl.program_id(1)

    @pl.when(k == 0)
    def _():
        s_acc[...] = jnp.zeros_like(s_acc)
        sq_acc[...] = jnp.zeros_like(sq_acc)

    x = x_ref[...].astype(jnp.float32)
    smat = smat_ref[...]
    s_acc[...] += jnp.dot(x, smat, preferred_element_type=jnp.float32)
    sq_acc[...] += jnp.dot(x * x, smat, preferred_element_type=jnp.float32)

    @pl.when(k == pl.num_programs(1) - 1)
    def _():
        s = s_acc[...]
        o_ref[...] = (0.5 * (s * s - sq_acc[...])).astype(o_ref.dtype)


def fm_part(x, *, tile_b=None, tile_fd=None):
    """Pallas TPU forward of FM_Part: x (B, F, D) -> 0.5*((sum_f x)^2 - sum_f x^2), (B, D)."""
    B, F, D = x.shape
    itemsize = jnp.dtype(x.dtype).itemsize
    auto_tb, auto_tfd, vmem_limit = _plan_tiles(B, F, D, itemsize)
    if tile_b is None:
        tile_b = auto_tb
    if tile_fd is None:
        tile_fd = auto_tfd
    tile_b = max(_SUBLANE, (int(tile_b) // _SUBLANE) * _SUBLANE)
    tile_fd = int(tile_fd)
    assert tile_fd % D == 0 and (F * D) % tile_fd == 0, "chunk must cover whole fields and divide F*D"
    assert tile_fd == F * D or tile_fd % _LANE == 0, "chunk must be lane (128) aligned"

    # Lane-dense view (free contiguous reshape): dense HBM->VMEM DMA, no per-field padding.
    x2 = x.reshape(B, F * D)

    nb = pl.cdiv(B, tile_b)      # ragged tail handled as a partial block (no jnp.pad copy)
    nk = (F * D) // tile_fd
    grid = (nb, nk)

    x_spec = pl.BlockSpec((tile_b, tile_fd), lambda i, k: (i, k))
    o_spec = pl.BlockSpec((tile_b, D), lambda i, k: (i, 0))
    scratch = [pltpu.VMEM((tile_b, D), jnp.float32),
               pltpu.VMEM((tile_b, D), jnp.float32)]

    mxu_path = (D % _LANE) != 0
    if mxu_path:
        # Stacked identity: S[f*D + i, j] = (i == j); same matrix for every chunk, so the
        # constant index_map keeps it resident in VMEM (DMA'd once).
        smat = jnp.tile(jnp.eye(D, dtype=jnp.float32), (tile_fd // D, 1))
        in_specs = [x_spec, pl.BlockSpec((tile_fd, D), lambda i, k: (0, 0))]
        operands = (x2, smat)
        kernel = _fm_kernel_mxu
        flops = 4 * B * F * D * D + 3 * B * D
        bytes_accessed = B * F * D * itemsize + B * D * itemsize + tile_fd * D * 4
    else:
        in_specs = [x_spec]
        operands = (x2,)
        kernel = _fm_kernel_fields
        flops = 3 * B * F * D + 3 * B * D
        bytes_accessed = B * F * D * itemsize + B * D * itemsize

    return pl.pallas_call(
        kernel,
        out_shape=jax.ShapeDtypeStruct((B, D), x.dtype),
        grid_spec=pltpu.PrefetchScalarGridSpec(
            num_scalar_prefetch=0,
            grid=grid,
            in_specs=in_specs,
            out_specs=o_spec,
            scratch_shapes=scratch,
        ),
        compiler_params=pltpu.CompilerParams(
            dimension_semantics=("parallel", "arbitrary"),
            vmem_limit_bytes=vmem_limit,
        ),
        cost_estimate=pl.CostEstimate(flops=int(flops), transcendentals=0,
                                      bytes_accessed=int(bytes_accessed)),
    )(*operands)


def fm_part_ref(x):
    xf = x.astype(jnp.float32)
    s = jnp.sum(xf, axis=1)
    sq = jnp.sum(xf * xf, axis=1)
    return (0.5 * (s * s - sq)).astype(x.dtype)


if __name__ == "__main__":
    key = jax.random.PRNGKey(0)
    ks = jax.random.split(key, 5)

    # 1) D < 128 -> MXU stacked-identity reduction; auto tiles give a 2-step "parallel" grid.
    x = jax.random.normal(ks[0], (64, 4, 32), dtype=jnp.float32)
    out = jax.block_until_ready(fm_part(x))
    assert out.shape == (64, 32), out.shape
    assert jnp.allclose(out, fm_part_ref(x), atol=1e-5, rtol=1e-5), "mismatch (mxu)"

    # 2) Ragged batch: partial last block masked by Pallas (no jnp.pad HBM copy).
    xr = jax.random.normal(ks[1], (52, 4, 32), dtype=jnp.float32)
    outr = jax.block_until_ready(fm_part(xr, tile_b=16))
    assert outr.shape == (52, 32), outr.shape
    assert jnp.allclose(outr, fm_part_ref(xr), atol=1e-5, rtol=1e-5), "mismatch (ragged)"

    # 3) D % 128 == 0 -> per-field VPU slab path (static <=8-field unroll over Ref slices).
    xa = jax.random.normal(ks[2], (16, 3, 128), dtype=jnp.float32)
    outa = jax.block_until_ready(fm_part(xa))
    assert outa.shape == (16, 128), outa.shape
    assert jnp.allclose(outa, fm_part_ref(xa), atol=1e-5, rtol=1e-5), "mismatch (aligned)"

    # 4) Many fields (F=12), aligned D -> automatic F*D chunking across an "arbitrary"
    #    reduction grid axis with f32 scratch accumulators.
    xm = jax.random.normal(ks[3], (16, 12, 128), dtype=jnp.float32)
    outm = jax.block_until_ready(fm_part(xm))
    assert outm.shape == (16, 128), outm.shape
    assert jnp.allclose(outm, fm_part_ref(xm), atol=1e-5, rtol=1e-5), "mismatch (chunked aligned)"

    # 5) bf16 inputs (16-row sublane packing, f32 accumulation) + forced F*D chunking on
    #    the MXU path (nk=2).
    xb = jax.random.normal(ks[4], (32, 8, 32), dtype=jnp.bfloat16)
    outb = jax.block_until_ready(fm_part(xb, tile_fd=128))
    assert outb.shape == (32, 32), outb.shape
    assert jnp.allclose(outb.astype(jnp.float32), fm_part_ref(xb).astype(jnp.float32),
                        atol=5e-2, rtol=5e-2), "mismatch (bf16 chunked mxu)"

    print("KERNEL_OK")
</pallas_src>

<mosaic_0001>
module attributes {stable_mosaic.version = 11 : i64} {
  func.func @_fm_kernel_mxu(%arg0: i32, %arg1: i32, %arg2: memref<32x128xf32, #tpu.memory_space<vmem>>, %arg3: memref<128x32xf32, #tpu.memory_space<vmem>>, %arg4: memref<32x32xf32, #tpu.memory_space<vmem>>, %arg5: memref<32x32xf32, #tpu.memory_space<vmem>>, %arg6: memref<32x32xf32, #tpu.memory_space<vmem>>) attributes {dimension_semantics = [#tpu.dimension_semantics<parallel>, #tpu.dimension_semantics<arbitrary>], iteration_bounds = array<i64: 2, 1>, scalar_prefetch = 0 : i64, scratch_operands = 2 : i64, tpu.core_type = #tpu.core_type<tc>, window_params = [{transform_indices = @transform_0, window_bounds = array<i64: 32, 128>}, {pipeline_mode = #tpu.pipeline_mode<synchronous>, transform_indices = @transform_1, window_bounds = array<i64: 128, 32>}, {transform_indices = @transform_2, window_bounds = array<i64: 32, 32>}]} {
    %c0_i32 = arith.constant 0 : i32
    %0 = arith.cmpi eq, %arg1, %c0_i32 : i32
    %1 = arith.extui %0 : i1 to i32
    %c0_i32_0 = arith.constant 0 : i32
    %2 = arith.cmpi ne, %1, %c0_i32_0 : i32
    scf.if %2 {
      %cst_15 = arith.constant 0.000000e+00 : f32
      %17 = vector.broadcast %cst_15 : f32 to vector<32x32xf32>
      %c0_16 = arith.constant 0 : index
      %c0_17 = arith.constant 0 : index
      %18 = vector.load %arg5[%c0_16, %c0_17] : memref<32x32xf32, #tpu.memory_space<vmem>>, vector<32x32xf32>
      tpu.vector_store %arg5[%c0_16, %c0_17], %17 {strides = array<i32>} : memref<32x32xf32, #tpu.memory_space<vmem>>, vector<32x32xf32>,
      %cst_18 = arith.constant 0.000000e+00 : f32
      %19 = vector.broadcast %cst_18 : f32 to vector<32x32xf32>
      %c0_19 = arith.constant 0 : index
      %c0_20 = arith.constant 0 : index
      %20 = vector.load %arg6[%c0_19, %c0_20] : memref<32x32xf32, #tpu.memory_space<vmem>>, vector<32x32xf32>
      tpu.vector_store %arg6[%c0_19, %c0_20], %19 {strides = array<i32>} : memref<32x32xf32, #tpu.memory_space<vmem>>, vector<32x32xf32>,
    } else {
    }
    %c0 = arith.constant 0 : index
    %c0_1 = arith.constant 0 : index
    %3 = vector.load %arg2[%c0, %c0_1] : memref<32x128xf32, #tpu.memory_space<vmem>>, vector<32x128xf32>
    %c0_2 = arith.constant 0 : index
    %c0_3 = arith.constant 0 : index
    %4 = vector.load %arg3[%c0_2, %c0_3] : memref<128x32xf32, #tpu.memory_space<vmem>>, vector<128x32xf32>
    %c0_4 = arith.constant 0 : index
    %c0_5 = arith.constant 0 : index
    %5 = vector.load %arg5[%c0_4, %c0_5] : memref<32x32xf32, #tpu.memory_space<vmem>>, vector<32x32xf32>
    %cst = arith.constant dense<0.000000e+00> : vector<32x32xf32>
    %6 = tpu.matmul %3, %4, %cst {dimension_numbers = #tpu.dot_dimension_numbers<[1], [0], [0], [1], [0, 0, 1, 1], [], []>} : vector<32x128xf32>, vector<128x32xf32>, vector<32x32xf32> -> vector<32x32xf32>
    %7 = arith.addf %5, %6 : vector<32x32xf32>
    %c0_6 = arith.constant 0 : index
    %c0_7 = arith.constant 0 : index
    %8 = vector.load %arg5[%c0_6, %c0_7] : memref<32x32xf32, #tpu.memory_space<vmem>>, vector<32x32xf32>
    tpu.vector_store %arg5[%c0_6, %c0_7], %7 {strides = array<i32>} : memref<32x32xf32, #tpu.memory_space<vmem>>, vector<32x32xf32>,
    %c0_8 = arith.constant 0 : index
    %c0_9 = arith.constant 0 : index
    %9 = vector.load %arg6[%c0_8, %c0_9] : memref<32x32xf32, #tpu.memory_space<vmem>>, vector<32x32xf32>
    %10 = arith.mulf %3, %3 : vector<32x128xf32>
    %cst_10 = arith.constant dense<0.000000e+00> : vector<32x32xf32>
    %11 = tpu.matmul %10, %4, %cst_10 {dimension_numbers = #tpu.dot_dimension_numbers<[1], [0], [0], [1], [0, 0, 1, 1], [], []>} : vector<32x128xf32>, vector<128x32xf32>, vector<32x32xf32> -> vector<32x32xf32>
    %12 = arith.addf %9, %11 : vector<32x32xf32>
    %c0_11 = arith.constant 0 : index
    %c0_12 = arith.constant 0 : index
    %13 = vector.load %arg6[%c0_11, %c0_12] : memref<32x32xf32, #tpu.memory_space<vmem>>, vector<32x32xf32>
    tpu.vector_store %arg6[%c0_11, %c0_12], %12 {strides = array<i32>} : memref<32x32xf32, #tpu.memory_space<vmem>>, vector<32x32xf32>,
    %c0_i32_13 = arith.constant 0 : i32
    %14 = arith.cmpi eq, %arg1, %c0_i32_13 : i32
    %15 = arith.extui %14 : i1 to i32
    %c0_i32_14 = arith.constant 0 : i32
    %16 = arith.cmpi ne, %15, %c0_i32_14 : i32
    scf.if %16 {
      %c0_15 = arith.constant 0 : index
      %c0_16 = arith.constant 0 : index
      %17 = vector.load %arg5[%c0_15, %c0_16] : memref<32x32xf32, #tpu.memory_space<vmem>>, vector<32x32xf32>
      %18 = arith.mulf %17, %17 : vector<32x32xf32>
      %c0_17 = arith.constant 0 : index
      %c0_18 = arith.constant 0 : index
      %19 = vector.load %arg6[%c0_17, %c0_18] : memref<32x32xf32, #tpu.memory_space<vmem>>, vector<32x32xf32>
      %20 = arith.subf %18, %19 : vector<32x32xf32>
      %cst_19 = arith.constant 5.000000e-01 : f32
      %21 = vector.broadcast %cst_19 : f32 to vector<32x32xf32>
      %22 = arith.mulf %21, %20 : vector<32x32xf32>
      %c0_20 = arith.constant 0 : index
      %c0_21 = arith.constant 0 : index
      %23 = vector.load %arg4[%c0_20, %c0_21] : memref<32x32xf32, #tpu.memory_space<vmem>>, vector<32x32xf32>
      tpu.vector_store %arg4[%c0_20, %c0_21], %22 {strides = array<i32>} : memref<32x32xf32, #tpu.memory_space<vmem>>, vector<32x32xf32>,
    } else {
    }
    return
  }
  func.func @transform_0(%arg0: i32, %arg1: i32) -> (i32, i32) {
    %c0_i32 = arith.constant 0 : i32
    return %arg0, %arg1 : i32, i32
  }
  func.func @transform_1(%arg0: i32, %arg1: i32) -> (i32, i32) {
    %c0_i32 = arith.constant 0 : i32
    %c0_i32_0 = arith.constant 0 : i32
    %c0_i32_1 = arith.constant 0 : i32
    return %c0_i32, %c0_i32_0 : i32, i32
  }
  func.func @transform_2(%arg0: i32, %arg1: i32) -> (i32, i32) {
    %c0_i32 = arith.constant 0 : i32
    %c0_i32_0 = arith.constant 0 : i32
    return %arg0, %c0_i32 : i32, i32
  }
}

</mosaic_0001>

<llo_original>
// kernel: tpu_custom_call.1
$region0: #{tpu_custom_call.1}
  #allocation0 [shape = 'u32[]', space=smem, size = 0x4, offset = 0x4, fixed_abs, tag = 'smem constant byte address 0x4 - core index']
  #allocation1 [shape = 'u32[144,128]{1,0:T(1,128)}', space=vmem, size = 0x12000, scoped, tag = 'internal scratch']
  #allocation2 [shape = 'f32[32,32]{1,0:T(8,128)}', space=vmem, size = 0x4000, scoped, tag = 'scratch operand']
  #allocation3 [shape = 'f32[32,32]{1,0:T(8,128)}', space=vmem, size = 0x4000, scoped, tag = 'scratch operand']
  %s0 = inlined_call_operand.vmem [shape: f32[64,128], index: 0, kind: input, shape index: {}]
  %s1 = inlined_call_operand.vmem [shape: f32[128,32], index: 1, kind: input, shape index: {}]
  %s2 = inlined_call_operand.vmem [shape: f32[64,32], index: 2, kind: output, shape index: {}]
  %s3 = sld [smem:[#allocation0]]
  $region49: #{tpu_custom_call.1} parent=0
    _
  %s5 = ssub.s32 1, %s3
  %s6 = scalar_select 0, %s5, %s3
  loop: start=0, step=1, limit=4
  $region2: #{tpu_custom_call.1} parent=0 // loop_pre_header
    _
  $region3: #{tpu_custom_call.1} parent=0 // loop_header
    %s8 = sphi 0, %s12
    %p9 = scmp.ge.s32.totalorder %s8, 4
    %s15 = sphi 0, %s27
    %s16 = sphi 0, %s23
    %s17 = sphi 0, %s15
    %s18 = sphi 0, %s16
    %s19 = sphi 0, %s17
    %s20 = sphi 0, %s18
    %s32 = sphi 0, %s34
    %s35 = sphi 0, %s32
    %s36 = sphi 0, %s35
    %s52 = sphi 0, %s36
    %s56 = sphi 0, %s56
    %s58 = sphi 0, %s56
    %s59 = sphi 0, %s58
    %s73 = sphi 0, %s59
    %s79 = sphi 0, %s81
    %s82 = sphi 0, %s79
    %s83 = sphi 0, %s82
    %s99 = sphi 0, %s83
  $region4: #{tpu_custom_call.1} parent=0 // loop_header_branch
    %11 = sbr.rel (%p9) target = $region8
  $region5: #{tpu_custom_call.1} parent=0 // loop_body
    %s13 = ssub.s32 %s8, 1
    %s14 = ssub.s32 %s8, 2
    %s21 = sadd.s32 1, %s16
    %p22 = scmp.ge.s32.totalorder %s21, 1
    %s23 = scalar_select %p22, 0, %s21
    %s24 = sadd.s32 1, %s15
    %s25 = scalar_select %p22, %s24, %s15
    %p26 = scmp.ge.s32.totalorder %s25, 2
    %s27 = scalar_select %p26, 0, %s25
    %s28 = ssub.s32 %s15, %s27
    %s29 = ssub.s32 %s16, %s23
    %s30 = sor.u32 %s28, %s29
    %p31 = scmp.eq.s32.totalorder %s30, 0
    %s33 = sadd.s32 %s32, 1
    %s34 = scalar_select %p31, %s32, %s33
    %p37 = pneg %p31
    %p38 = scmp.eq.s32.totalorder %s8, 1
    %p39 = por %p37, %p38
    %p40 = scmp.ne.s32.totalorder %s32, %s35
    %p41 = scmp.eq.s32.totalorder %s8, 0
    %p42 = por %p40, %p41
    %p43 = scmp.ne.s32.totalorder %s32, %s35
    %p44 = scmp.eq.s32.totalorder %s13, 1
    %p45 = por %p43, %p44
    %p46 = scmp.ne.s32.totalorder %s35, %s36
    %p47 = scmp.eq.s32.totalorder %s13, 0
    %p48 = por %p46, %p47
    %p49 = scmp.ne.s32.totalorder %s35, %s36
    %p50 = scmp.eq.s32.totalorder %s14, 1
    %p51 = por %p49, %p50
    %p53 = scmp.ne.s32.totalorder %s36, %s52
    %p54 = scmp.eq.s32.totalorder %s14, 0
    %p55 = por %p53, %p54
    %s57 = sadd.s32 %s56, 1
    %p60 = scmp.eq.s32.totalorder %s8, 1
    %p61 = scmp.ne.s32.totalorder %s56, %s58
    %p62 = scmp.eq.s32.totalorder %s8, 0
    %p63 = por %p61, %p62
    %p64 = scmp.ne.s32.totalorder %s56, %s58
    %p65 = scmp.eq.s32.totalorder %s13, 1
    %p66 = por %p64, %p65
    %p67 = scmp.ne.s32.totalorder %s58, %s59
    %p68 = scmp.eq.s32.totalorder %s13, 0
    %p69 = por %p67, %p68
    %p70 = scmp.ne.s32.totalorder %s58, %s59
    %p71 = scmp.eq.s32.totalorder %s14, 1
    %p72 = por %p70, %p71
    %p74 = scmp.ne.s32.totalorder %s59, %s73
    %p75 = scmp.eq.s32.totalorder %s14, 0
    %p76 = por %p74, %p75
    %s77 = ssub.s32 %s15, %s27
    %p78 = scmp.eq.s32.totalorder %s77, 0
    %s80 = sadd.s32 %s79, 1
    %s81 = scalar_select %p78, %s79, %s80
    %p84 = pneg %p78
    %p85 = scmp.eq.s32.totalorder %s8, 1
    %p86 = por %p84, %p85
    %p87 = scmp.ne.s32.totalorder %s79, %s82
    %p88 = scmp.eq.s32.totalorder %s8, 0
    %p89 = por %p87, %p88
    %p90 = scmp.ne.s32.totalorder %s79, %s82
    %p91 = scmp.eq.s32.totalorder %s13, 1
    %p92 = por %p90, %p91
    %p93 = scmp.ne.s32.totalorder %s82, %s83
    %p94 = scmp.eq.s32.totalorder %s13, 0
    %p95 = por %p93, %p94
    %p96 = scmp.ne.s32.totalorder %s82, %s83
    %p97 = scmp.eq.s32.totalorder %s14, 1
    %p98 = por %p96, %p97
    %p100 = scmp.ne.s32.totalorder %s83, %s99
    %p101 = scmp.eq.s32.totalorder %s14, 0
    %p102 = por %p100, %p101
    %p103 = scmp.le.s32.totalorder 1, %s8
    %p104 = scmp.lt.s32.totalorder %s8, 3
    %p105 = pnand %p103, %p104
    %p106 = pneg %p105
    // Predicated region
    $region9: #{tpu_custom_call.1} parent=5 // pred_check
      _
    $region10: #{tpu_custom_call.1} parent=5 // pred_check_branch
      %108 = sbr.rel (%p105) target = $region12
    $region11: #{tpu_custom_call.1} parent=5 // pred_region
      %s109 = ssub.s32 %s8, 1
      // Predicated region
      $region13: #{tpu_custom_call.1} parent=11 // pred_check
        %p110 = pneg %p69
      $region14: #{tpu_custom_call.1} parent=11 // pred_check_branch
        %112 = sbr.rel (%p110) target = $region16
      $region15: #{tpu_custom_call.1} parent=11 // pred_region
        _
      $region16: #{tpu_custom_call.1} parent=11 // pred_fallthru
        _
    $region12: #{tpu_custom_call.1} parent=5 // pred_fallthru
      _
    %p113 = scmp.lt.s32.totalorder %s8, 2
    // Predicated region
    $region17: #{tpu_custom_call.1} parent=5 // pred_check
      %p114 = pneg %p113
    $region18: #{tpu_custom_call.1} parent=5 // pred_check_branch
      %116 = sbr.rel (%p114) target = $region20
    $region19: #{tpu_custom_call.1} parent=5 // pred_region
      // Predicated region
      $region21: #{tpu_custom_call.1} parent=19 // pred_check
        %p117 = pneg %p42
      $region22: #{tpu_custom_call.1} parent=19 // pred_check_branch
        %119 = sbr.rel (%p117) target = $region24
      $region23: #{tpu_custom_call.1} parent=19 // pred_region
        %s120 = smul.u32 4, %s15
        %p121 = scmp.lt.s32.totalorder %s120, 7
        %s122 = scalar_select %p121, %s120, 7
        %p123 = scmp.lt.s32.totalorder %s16, 0
        %s124 = scalar_select %p123, %s16, 0
        %s125 = sadd.s32 %s124, %s122
        %s126 = smul.addr %s125, 8
        %s127 = scalar_lea.vmem %s0, %s126
        %s128 = smul.u32 4, %s15
      $region24: #{tpu_custom_call.1} parent=19 // pred_fallthru
        _
    $region20: #{tpu_custom_call.1} parent=5 // pred_fallthru
      _
    %p129 = scmp.le.s32.totalorder 1, %s8
    %p130 = scmp.lt.s32.totalorder %s8, 3
    %p131 = pnand %p129, %p130
    %p132 = pneg %p131
    // Predicated region
    $region25: #{tpu_custom_call.1} parent=5 // pred_check
      _
    $region26: #{tpu_custom_call.1} parent=5 // pred_check_branch
      %134 = sbr.rel (%p131) target = $region28
    $region27: #{tpu_custom_call.1} parent=5 // pred_region
      %s135 = ssub.s32 %s8, 1
      %s136 = smul.u32 4, %s17
      %p137 = scmp.lt.s32.totalorder %s136, 7
      %s138 = scalar_select %p137, %s136, 7
      %p139 = scmp.lt.s32.totalorder %s18, 0
      %s140 = scalar_select %p139, %s18, 0
      %s141 = sadd.s32 %s140, %s138
      %s142 = smul.addr %s141, 8
      %s143 = scalar_lea.vmem %s0, %s142
      %p144 = pneg %p48
      %p145 = pneg %p45
      %p146 = pneg %p69
      %p147 = pneg %p66
      %p148 = pneg %p95
      %p149 = pneg %p92
      %s150 = smul.u32 4, %s17
      %p151 = scmp.lt.s32.totalorder %s150, 7
      %s152 = scalar_select %p151, %s150, 7
      %s153 = smul.addr %s152, 8
      %s154 = scalar_lea.vmem %s2, %s153
      %s155 = smul.u32 4, %s17
      %p156 = scmp.lt.s32.totalorder %s155, 7
      %s157 = scalar_select %p156, %s155, 7
      %p158 = scmp.lt.s32.totalorder %s18, 0
      %s159 = scalar_select %p158, %s18, 0
      %s160 = sadd.s32 %s159, %s157
      %s161 = smul.addr %s160, 8
      %s162 = scalar_lea.vmem %s0, %s161
      %s163 = smul.u32 4, %s17
      %s164 = smul.u32 4, %s17
      %p165 = scmp.lt.s32.totalorder %s164, 7
      %s166 = scalar_select %p165, %s164, 7
      %s167 = smul.addr %s166, 8
      %s168 = scalar_lea.vmem %s2, %s167
      %s169 = smul.u32 4, %s17
      %p170 = scmp.eq.s32.totalorder %s18, 0
      // Predicated region
      $region29: #{tpu_custom_call.1} parent=27 // pred_check
        %p171 = pneg %p170
      $region30: #{tpu_custom_call.1} parent=27 // pred_check_branch
        %173 = sbr.rel (%p171) target = $region32
      $region31: #{tpu_custom_call.1} parent=27 // pred_region
        %vm174 = vcmask 261120
        %175 = vst.msk [vmem:[#allocation2] sm:$0xff] %vm174, 0.0
        %176 = vst.msk [vmem:[#allocation2 + $0x8] sm:$0xff] %vm174, 0.0
        %177 = vst.msk [vmem:[#allocation2 + $0x10] sm:$0xff] %vm174, 0.0
        %178 = vst.msk [vmem:[#allocation2 + $0x18] sm:$0xff] %vm174, 0.0
        %179 = vst.msk [vmem:[#allocation3] sm:$0xff] %vm174, 0.0
        %180 = vst.msk [vmem:[#allocation3 + $0x8] sm:$0xff] %vm174, 0.0
        %181 = vst.msk [vmem:[#allocation3 + $0x10] sm:$0xff] %vm174, 0.0
        %182 = vst.msk [vmem:[#allocation3 + $0x18] sm:$0xff] %vm174, 0.0
      $region32: #{tpu_custom_call.1} parent=27 // pred_fallthru
        _
      %v183 = vld [vmem:[%s162] sm:$0xff]
      %v184 = vld [vmem:[%s162 + $0x8] sm:$0xff]
      %v185 = vld [vmem:[%s162 + $0x10] sm:$0xff]
      %v186 = vld [vmem:[%s162 + $0x18] sm:$0xff]
      %v187 = vld [vmem:[%s1] sm:$0xff]
      %v188 = vld [vmem:[%s1 + $0x8] sm:$0xff]
      %v189 = vld [vmem:[%s1 + $0x10] sm:$0xff]
      %v190 = vld [vmem:[%s1 + $0x18] sm:$0xff]
      %v191 = vld [vmem:[%s1 + $0x20] sm:$0xff]
      %v192 = vld [vmem:[%s1 + $0x28] sm:$0xff]
      %v193 = vld [vmem:[%s1 + $0x30] sm:$0xff]
      %v194 = vld [vmem:[%s1 + $0x38] sm:$0xff]
      %v195 = vld [vmem:[%s1 + $0x40] sm:$0xff]
      %v196 = vld [vmem:[%s1 + $0x48] sm:$0xff]
      %v197 = vld [vmem:[%s1 + $0x50] sm:$0xff]
      %v198 = vld [vmem:[%s1 + $0x58] sm:$0xff]
      %v199 = vld [vmem:[%s1 + $0x60] sm:$0xff]
      %v200 = vld [vmem:[%s1 + $0x68] sm:$0xff]
      %v201 = vld [vmem:[%s1 + $0x70] sm:$0xff]
      %v202 = vld [vmem:[%s1 + $0x78] sm:$0xff]
      %v203 = vld [vmem:[#allocation2] sm:$0xff]
      %v204 = vld [vmem:[#allocation2 + $0x8] sm:$0xff]
      %v205 = vld [vmem:[#allocation2 + $0x10] sm:$0xff]
      %v206 = vld [vmem:[#allocation2 + $0x18] sm:$0xff]
      %207 = vmatprep.subr.mxu0 0.0
      %208 = vmatpush1.msra.mxu0 %v187
      %209 = vmatprep.subr.mxu0 0.0
      %210 = vmatpush1.msra.mxu0 %v188
      %211 = vmatprep.subr.mxu0 0.0
      %212 = vmatpush1.msra.mxu0 %v189
      %213 = vmatprep.subr.mxu0 0.0
      %214 = vmatpush1.msra.mxu0 %v190
      %215 = vmatprep.subr.mxu0 0.0
      %216 = vmatpush1.msra.mxu0 %v191
      %217 = vmatprep.subr.mxu0 0.0
      %218 = vmatpush1.msra.mxu0 %v192
      %219 = vmatprep.subr.mxu0 0.0
      %220 = vmatpush1.msra.mxu0 %v193
      %221 = vmatprep.subr.mxu0 0.0
      %222 = vmatpush1.msra.mxu0 %v194
      %223 = vmatprep.subr.mxu0 0.0
      %224 = vmatpush1.msra.mxu0 %v195
      %225 = vmatprep.subr.mxu0 0.0
      %226 = vmatpush1.msra.mxu0 %v196
      %227 = vmatprep.subr.mxu0 0.0
      %228 = vmatpush1.msra.mxu0 %v197
      %229 = vmatprep.subr.mxu0 0.0
      %230 = vmatpush1.msra.mxu0 %v198
      %231 = vmatprep.subr.mxu0 0.0
      %232 = vmatpush1.msra.mxu0 %v199
      %233 = vmatprep.subr.mxu0 0.0
      %234 = vmatpush1.msra.mxu0 %v200
      %235 = vmatprep.subr.mxu0 0.0
      %236 = vmatpush1.msra.mxu0 %v201
      %237 = vmatprep.subr.mxu0 0.0
      %238 = vmatpush1.msra.mxu0 %v202
      %239 = vmatprep.subr.mxu0 0.0
      %240 = vmatpush1.msra.mxu0 0.0
      %241 = vmatprep.subr.mxu0 0.0
      %242 = vmatpush1.msra.mxu0 0.0
      %243 = vmatprep.subr.mxu0 0.0
      %244 = vmatpush1.msra.mxu0 0.0
      %245 = vmatprep.subr.mxu0 0.0
      %246 = vmatpush1.msra.mxu0 0.0
      %247 = vmatprep.subr.mxu0 0.0
      %248 = vmatpush1.msra.mxu0 0.0
      %249 = vmatprep.subr.mxu0 0.0
      %250 = vmatpush1.msra.mxu0 0.0
      %251 = vmatprep.subr.mxu0 0.0
      %252 = vmatpush1.msra.mxu0 0.0
      %253 = vmatprep.subr.mxu0 0.0
      %254 = vmatpush1.msra.mxu0 0.0
      %255 = vmatprep.subr.mxu0 0.0
      %256 = vmatpush1.msra.mxu0 0.0
      %257 = vmatprep.subr.mxu0 0.0
      %258 = vmatpush1.msra.mxu0 0.0
      %259 = vmatprep.subr.mxu0 0.0
      %260 = vmatpush1.msra.mxu0 0.0
      %261 = vmatprep.subr.mxu0 0.0
      %262 = vmatpush1.msra.mxu0 0.0
      %263 = vmatprep.subr.mxu0 0.0
      %264 = vmatpush1.msra.mxu0 0.0
      %265 = vmatprep.subr.mxu0 0.0
      %266 = vmatpush1.msra.mxu0 0.0
      %267 = vmatprep.subr.mxu0 0.0
      %268 = vmatpush1.msra.mxu0 0.0
      %269 = vmatprep.subr.mxu0 0.0
      %270 = vmatpush1.msra.mxu0 0.0
      %271 = vmatprep.mubr.f32.mxu0 0.0
      %272 = vmatmul.mubr.f32.gmra.mrb[0].mxu0 %v183
      %v273 = vpop.f32.mrb[0].mxu0
      %v274 = vadd.f32 0.0, %v273
      %v275 = vpop.f32.mrb[0].mxu0
      %276 = vmatprep.mubr.f32.mxu0 0.0
      %277 = vmatmul.mubr.f32.gmra.mrb[0].mxu0 %v184
      %v278 = vpop.f32.mrb[0].mxu0
      %v279 = vadd.f32 0.0, %v278
      %v280 = vpop.f32.mrb[0].mxu0
      %281 = vmatprep.mubr.f32.mxu0 0.0
      %282 = vmatmul.mubr.f32.gmra.mrb[0].mxu0 %v185
      %v283 = vpop.f32.mrb[0].mxu0
      %v284 = vadd.f32 0.0, %v283
      %v285 = vpop.f32.mrb[0].mxu0
      %286 = vmatprep.mubr.f32.mxu0 0.0
      %287 = vmatmul.mubr.f32.gmra.mrb[0].mxu0 %v186
      %v288 = vpop.f32.mrb[0].mxu0
      %v289 = vadd.f32 0.0, %v288
      %v290 = vpop.f32.mrb[0].mxu0
      %291 = vdwg.mxu0
      %v292 = vadd.f32 %v203, %v274
      %v293 = vadd.f32 %v204, %v279
      %v294 = vadd.f32 %v205, %v284
      %v295 = vadd.f32 %v206, %v289
      %vm296 = vcmask 261120
      %297 = vst.msk [vmem:[#allocation2] sm:$0xff] %vm296, %v292
      %298 = vst.msk [vmem:[#allocation2 + $0x8] sm:$0xff] %vm296, %v293
      %299 = vst.msk [vmem:[#allocation2 + $0x10] sm:$0xff] %vm296, %v294
      %300 = vst.msk [vmem:[#allocation2 + $0x18] sm:$0xff] %vm296, %v295
      %v301 = vld [vmem:[#allocation3] sm:$0xff]
      %v302 = vld [vmem:[#allocation3 + $0x8] sm:$0xff]
      %v303 = vld [vmem:[#allocation3 + $0x10] sm:$0xff]
      %v304 = vld [vmem:[#allocation3 + $0x18] sm:$0xff]
      %v305 = vmul.f32 %v183, %v183
      %v306 = vmul.f32 %v184, %v184
      %v307 = vmul.f32 %v185, %v185
      %v308 = vmul.f32 %v186, %v186
      %309 = vmatprep.subr.mxu0 0.0
      %310 = vmatpush1.msra.mxu0 %v187
      %311 = vmatprep.subr.mxu0 0.0
      %312 = vmatpush1.msra.mxu0 %v188
      %313 = vmatprep.subr.mxu0 0.0
      %314 = vmatpush1.msra.mxu0 %v189
      %315 = vmatprep.subr.mxu0 0.0
      %316 = vmatpush1.msra.mxu0 %v190
      %317 = vmatprep.subr.mxu0 0.0
      %318 = vmatpush1.msra.mxu0 %v191
      %319 = vmatprep.subr.mxu0 0.0
      %320 = vmatpush1.msra.mxu0 %v192
      %321 = vmatprep.subr.mxu0 0.0
      %322 = vmatpush1.msra.mxu0 %v193
      %323 = vmatprep.subr.mxu0 0.0
      %324 = vmatpush1.msra.mxu0 %v194
      %325 = vmatprep.subr.mxu0 0.0
      %326 = vmatpush1.msra.mxu0 %v195
      %327 = vmatprep.subr.mxu0 0.0
      %328 = vmatpush1.msra.mxu0 %v196
      %329 = vmatprep.subr.mxu0 0.0
      %330 = vmatpush1.msra.mxu0 %v197
      %331 = vmatprep.subr.mxu0 0.0
      %332 = vmatpush1.msra.mxu0 %v198
      %333 = vmatprep.subr.mxu0 0.0
      %334 = vmatpush1.msra.mxu0 %v199
      %335 = vmatprep.subr.mxu0 0.0
      %336 = vmatpush1.msra.mxu0 %v200
      %337 = vmatprep.subr.mxu0 0.0
      %338 = vmatpush1.msra.mxu0 %v201
      %339 = vmatprep.subr.mxu0 0.0
      %340 = vmatpush1.msra.mxu0 %v202
      %341 = vmatprep.subr.mxu0 0.0
      %342 = vmatpush1.msra.mxu0 0.0
      %343 = vmatprep.subr.mxu0 0.0
      %344 = vmatpush1.msra.mxu0 0.0
      %345 = vmatprep.subr.mxu0 0.0
      %346 = vmatpush1.msra.mxu0 0.0
      %347 = vmatprep.subr.mxu0 0.0
      %348 = vmatpush1.msra.mxu0 0.0
      %349 = vmatprep.subr.mxu0 0.0
      %350 = vmatpush1.msra.mxu0 0.0
      %351 = vmatprep.subr.mxu0 0.0
      %352 = vmatpush1.msra.mxu0 0.0
      %353 = vmatprep.subr.mxu0 0.0
      %354 = vmatpush1.msra.mxu0 0.0
      %355 = vmatprep.subr.mxu0 0.0
      %356 = vmatpush1.msra.mxu0 0.0
      %357 = vmatprep.subr.mxu0 0.0
      %358 = vmatpush1.msra.mxu0 0.0
      %359 = vmatprep.subr.mxu0 0.0
      %360 = vmatpush1.msra.mxu0 0.0
      %361 = vmatprep.subr.mxu0 0.0
      %362 = vmatpush1.msra.mxu0 0.0
      %363 = vmatprep.subr.mxu0 0.0
      %364 = vmatpush1.msra.mxu0 0.0
      %365 = vmatprep.subr.mxu0 0.0
      %366 = vmatpush1.msra.mxu0 0.0
      %367 = vmatprep.subr.mxu0 0.0
      %368 = vmatpush1.msra.mxu0 0.0
      %369 = vmatprep.subr.mxu0 0.0
      %370 = vmatpush1.msra.mxu0 0.0
      %371 = vmatprep.subr.mxu0 0.0
      %372 = vmatpush1.msra.mxu0 0.0
      %373 = vmatprep.mubr.f32.mxu0 0.0
      %374 = vmatmul.mubr.f32.gmra.mrb[0].mxu0 %v305
      %v375 = vpop.f32.mrb[0].mxu0
      %v376 = vadd.f32 0.0, %v375
      %v377 = vpop.f32.mrb[0].mxu0
      %378 = vmatprep.mubr.f32.mxu0 0.0
      %379 = vmatmul.mubr.f32.gmra.mrb[0].mxu0 %v306
      %v380 = vpop.f32.mrb[0].mxu0
      %v381 = vadd.f32 0.0, %v380
      %v382 = vpop.f32.mrb[0].mxu0
      %383 = vmatprep.mubr.f32.mxu0 0.0
      %384 = vmatmul.mubr.f32.gmra.mrb[0].mxu0 %v307
      %v385 = vpop.f32.mrb[0].mxu0
      %v386 = vadd.f32 0.0, %v385
      %v387 = vpop.f32.mrb[0].mxu0
      %388 = vmatprep.mubr.f32.mxu0 0.0
      %389 = vmatmul.mubr.f32.gmra.mrb[0].mxu0 %v308
      %v390 = vpop.f32.mrb[0].mxu0
      %v391 = vadd.f32 0.0, %v390
      %v392 = vpop.f32.mrb[0].mxu0
      %393 = vdwg.mxu0
      %v394 = vadd.f32 %v301, %v376
      %v395 = vadd.f32 %v302, %v381
      %v396 = vadd.f32 %v303, %v386
      %v397 = vadd.f32 %v304, %v391
      %398 = vst.msk [vmem:[#allocation3] sm:$0xff] %vm296, %v394
      %399 = vst.msk [vmem:[#allocation3 + $0x8] sm:$0xff] %vm296, %v395
      %400 = vst.msk [vmem:[#allocation3 + $0x10] sm:$0xff] %vm296, %v396
      %401 = vst.msk [vmem:[#allocation3 + $0x18] sm:$0xff] %vm296, %v397
      // Predicated region
      $region33: #{tpu_custom_call.1} parent=27 // pred_check
        %p402 = pneg %p170
      $region34: #{tpu_custom_call.1} parent=27 // pred_check_branch
        %404 = sbr.rel (%p402) target = $region36
      $region35: #{tpu_custom_call.1} parent=27 // pred_region
        %v405 = vld [vmem:[#allocation2] sm:$0xff]
        %v406 = vld [vmem:[#allocation2 + $0x8] sm:$0xff]
        %v407 = vld [vmem:[#allocation2 + $0x10] sm:$0xff]
        %v408 = vld [vmem:[#allocation2 + $0x18] sm:$0xff]
        %v409 = vmul.f32 %v405, %v405
        %v410 = vmul.f32 %v406, %v406
        %v411 = vmul.f32 %v407, %v407
        %v412 = vmul.f32 %v408, %v408
        %v413 = vld [vmem:[#allocation3] sm:$0xff]
        %v414 = vld [vmem:[#allocation3 + $0x8] sm:$0xff]
        %v415 = vld [vmem:[#allocation3 + $0x10] sm:$0xff]
        %v416 = vld [vmem:[#allocation3 + $0x18] sm:$0xff]
        %v417 = vsub.f32 %v409, %v413
        %v418 = vsub.f32 %v410, %v414
        %v419 = vsub.f32 %v411, %v415
        %v420 = vsub.f32 %v412, %v416
        %v421 = vmul.f32 %v417, 0.5
        %v422 = vmul.f32 %v418, 0.5
        %v423 = vmul.f32 %v419, 0.5
        %v424 = vmul.f32 %v420, 0.5
        %425 = vst.msk [vmem:[%s168] sm:$0xff] %vm296, %v421
        %426 = vst.msk [vmem:[%s168 + $0x8] sm:$0xff] %vm296, %v422
        %427 = vst.msk [vmem:[%s168 + $0x10] sm:$0xff] %vm296, %v423
        %428 = vst.msk [vmem:[%s168 + $0x18] sm:$0xff] %vm296, %v424
      $region36: #{tpu_custom_call.1} parent=27 // pred_fallthru
        _
      %s429 = smul.u32 4, %s17
      %p430 = scmp.lt.s32.totalorder %s429, 7
      %s431 = scalar_select %p430, %s429, 7
      %s432 = smul.addr %s431, 8
      %s433 = scalar_lea.vmem %s2, %s432
      // Predicated region
      $region37: #{tpu_custom_call.1} parent=27 // pred_check
        %p434 = pneg %p92
      $region38: #{tpu_custom_call.1} parent=27 // pred_check_branch
        %436 = sbr.rel (%p434) target = $region40
      $region39: #{tpu_custom_call.1} parent=27 // pred_region
        %s437 = smul.u32 4, %s17
      $region40: #{tpu_custom_call.1} parent=27 // pred_fallthru
        _
    $region28: #{tpu_custom_call.1} parent=5 // pred_fallthru
      _
    %p438 = scmp.le.s32.totalorder 2, %s8
    // Predicated region
    $region41: #{tpu_custom_call.1} parent=5 // pred_check
      %p439 = pneg %p438
    $region42: #{tpu_custom_call.1} parent=5 // pred_check_branch
      %441 = sbr.rel (%p439) target = $region44
    $region43: #{tpu_custom_call.1} parent=5 // pred_region
      %s442 = ssub.s32 %s8, 2
      // Predicated region
      $region45: #{tpu_custom_call.1} parent=43 // pred_check
        %p443 = pneg %p98
      $region46: #{tpu_custom_call.1} parent=43 // pred_check_branch
        %445 = sbr.rel (%p443) target = $region48
      $region47: #{tpu_custom_call.1} parent=43 // pred_region
        %s446 = smul.u32 4, %s19
        %p447 = scmp.lt.s32.totalorder %s446, 7
        %s448 = scalar_select %p447, %s446, 7
        %s449 = smul.addr %s448, 8
        %s450 = scalar_lea.vmem %s2, %s449
      $region48: #{tpu_custom_call.1} parent=43 // pred_fallthru
        _
    $region44: #{tpu_custom_call.1} parent=5 // pred_fallthru
      _
  $region6: #{tpu_custom_call.1} parent=0 // loop_footer
    %s12 = sadd.s32 1, %s8
  $region7: #{tpu_custom_call.1} parent=0 // loop_footer_branch
    %7 = sbr.rel target = $region3
  $region8: #{tpu_custom_call.1} parent=0 // loop_exit
    _

</llo_original>
